<compile_context>
chip_gen: v6e
topology: v6e:2x2x1
jax: 0.10.0
libtpu: 0.0.40
codegen_flags: <defaults>
</compile_context>

<pallas_src>
import functools

import jax
import jax.numpy as jnp
from jax.experimental import pallas as pl
from jax.experimental.pallas import tpu as pltpu

LANE = 128
_FUSED_MAX_NPAD = 1024  # f32 adj <= 4 MiB -> fully VMEM-resident on all gens


def _pad_to(n, m):
    return ((n + m - 1) // m) * m


def _vmem_limit_bytes():
    # Leave headroom below physical VMEM (v7x TC: 64 MiB; v5e/v6e: 128 MiB).
    try:
        return int(pltpu.get_tpu_info().vmem_capacity_bytes * 0.75)
    except Exception:
        return 48 * 1024 * 1024


def _largest_divisor_tile(n_pad, cap):
    """Largest multiple of 128 that is <= cap and divides n_pad."""
    t = max(128, cap - cap % 128)
    t = min(t, n_pad)
    while n_pad % t:
        t -= 128
    return t


def _pick_tiles(n_pad):
    # Row tile <= 512, and keep >= 2 row tiles when possible so the "parallel"
    # axis actually shards across both v7x TensorCores.
    tm_cap = min(512, n_pad)
    if n_pad >= 2 * 128:
        tm_cap = min(tm_cap, n_pad // 2)
    tm = _largest_divisor_tile(n_pad, tm_cap)
    tk = _largest_divisor_tile(n_pad, min(2048, n_pad))
    return tm, tk


def _masked_log_softmax(z, n_valid):
    lane = jax.lax.broadcasted_iota(jnp.int32, z.shape, 1)
    valid = lane < n_valid
    zm = jnp.where(valid, z, -1e30)
    m = jnp.max(zm, axis=1, keepdims=True)
    e = jnp.where(valid, jnp.exp(zm - m), 0.0)
    lse = jnp.log(jnp.sum(e, axis=1, keepdims=True))
    return jnp.where(valid, zm - m - lse, 0.0)


# ---------------------------------------------------------------------------
# Fused small-graph kernel: both layers + log_softmax + mean pool, one launch.
# ---------------------------------------------------------------------------
def _fused_small_kernel(adj_ref, x_ref, w1_ref, b1_ref, w2_ref, b2_ref,
                        pool_ref, out_ref, *, n_classes):
    adj = adj_ref[...]                                        # reused by both layers
    h = jnp.dot(adj, x_ref[...], preferred_element_type=jnp.float32)
    h = jnp.dot(h, w1_ref[...], preferred_element_type=jnp.float32) + b1_ref[...]
    h = jnp.maximum(h, 0.0)
    # dropout = identity (eval mode)
    z = jnp.dot(adj, h, preferred_element_type=jnp.float32)
    z = jnp.dot(z, w2_ref[...], preferred_element_type=jnp.float32) + b2_ref[...]
    logp = _masked_log_softmax(z, n_classes)
    out_ref[...] = jnp.dot(pool_ref[...], logp,
                           preferred_element_type=jnp.float32)


def _gcn_fused_small(adj, x, w1, b1, w2, b2, pool, n_classes, vmem_limit):
    n_pad = adj.shape[0]
    fp, hp = w1.shape
    op = w2.shape[1]
    gp = pool.shape[0]

    flops = (2 * n_pad * n_pad * fp + 2 * n_pad * fp * hp
             + 2 * n_pad * n_pad * hp + 2 * n_pad * hp * op
             + 2 * gp * n_pad * op)
    bytes_accessed = int(adj.size * 4 + x.size * 4 + w1.size * 4 + w2.size * 4
                         + b1.size * 4 + b2.size * 4 + pool.size * 4
                         + gp * op * 4)

    kernel = functools.partial(_fused_small_kernel, n_classes=n_classes)
    return pl.pallas_call(
        kernel,
        out_shape=jax.ShapeDtypeStruct((gp, op), jnp.float32),
        grid_spec=pltpu.PrefetchScalarGridSpec(
            num_scalar_prefetch=0,
            grid=(1,),
            in_specs=[
                pl.BlockSpec((n_pad, n_pad), lambda i: (0, 0)),
                pl.BlockSpec((n_pad, fp), lambda i: (0, 0)),
                pl.BlockSpec((fp, hp), lambda i: (0, 0)),
                pl.BlockSpec((1, hp), lambda i: (0, 0)),
                pl.BlockSpec((hp, op), lambda i: (0, 0)),
                pl.BlockSpec((1, op), lambda i: (0, 0)),
                pl.BlockSpec((gp, n_pad), lambda i: (0, 0)),
            ],
            out_specs=pl.BlockSpec((gp, op), lambda i: (0, 0)),
        ),
        compiler_params=pltpu.CompilerParams(
            dimension_semantics=("arbitrary",),
            vmem_limit_bytes=vmem_limit,
        ),
        cost_estimate=pl.CostEstimate(flops=flops,
                                      transcendentals=n_pad * op,
                                      bytes_accessed=bytes_accessed),
    )(adj, x, w1, b1, w2, b2, pool)


# ---------------------------------------------------------------------------
# Tiled GCN layer:
#   acc  = sum_k adj[i, k*tk:(k+1)*tk] @ h[k*tk:(k+1)*tk, :]   (h VMEM-resident)
#   out  = epilogue(acc_bf16 @ W_bf16 + b)    fused at last reduction step
# epilogue = ReLU (layer 1) | masked log_softmax over valid lanes (layer 2)
# ---------------------------------------------------------------------------
def _gcn_layer_kernel(adj_ref, h_ref, w_ref, b_ref, out_ref, acc_ref, *,
                      tk, activation, n_valid_feat):
    k = pl.program_id(1)

    @pl.when(k == 0)
    def _():
        acc_ref[...] = jnp.zeros_like(acc_ref)

    ks = pl.multiple_of(k * tk, tk)
    acc_ref[...] += jnp.dot(adj_ref[...], h_ref[pl.ds(ks, tk), :],
                            preferred_element_type=jnp.float32)

    @pl.when(k == pl.num_programs(1) - 1)
    def _():
        # bf16 x bf16 MXU matmul for the small epilogue; accumulate in f32.
        z = jnp.dot(acc_ref[...].astype(jnp.bfloat16), w_ref[...],
                    preferred_element_type=jnp.float32) + b_ref[...]
        if activation == "relu":
            out_ref[...] = jnp.maximum(z, 0.0).astype(out_ref.dtype)
        else:  # masked log_softmax over the (padded) feature lanes
            out_ref[...] = _masked_log_softmax(z, n_valid_feat).astype(
                out_ref.dtype)


def _gcn_layer(adj, h, w, b, tm, tk, *, activation, n_valid_feat, out_dtype,
               vmem_limit):
    n_pad = adj.shape[0]
    f_in = h.shape[1]
    f_out = w.shape[1]
    grid = (n_pad // tm, n_pad // tk)

    out_itemsize = jnp.dtype(out_dtype).itemsize
    flops = 2 * n_pad * n_pad * f_in + 2 * n_pad * f_in * f_out
    transcendentals = n_pad * f_out if activation == "log_softmax" else 0
    # h is VMEM-resident (fetched once); adj streamed tile-by-tile.
    bytes_accessed = int(adj.size * adj.dtype.itemsize
                         + h.size * h.dtype.itemsize
                         + w.size * w.dtype.itemsize + b.size * 4
                         + n_pad * f_out * out_itemsize)

    kernel = functools.partial(_gcn_layer_kernel, tk=tk, activation=activation,
                               n_valid_feat=n_valid_feat)
    return pl.pallas_call(
        kernel,
        out_shape=jax.ShapeDtypeStruct((n_pad, f_out), out_dtype),
        grid_spec=pltpu.PrefetchScalarGridSpec(
            num_scalar_prefetch=0,
            grid=grid,
            in_specs=[
                # adj tile, streamed.  (pipeline_mode=pl.Buffered(3) is a
                # candidate v7x tuning knob -- sweep 2 vs 3 if DMA-bubble-bound.)
                pl.BlockSpec((tm, tk), lambda i, k: (i, k)),
                # feature matrix: full array, VMEM-resident across the grid.
                pl.BlockSpec((n_pad, f_in), lambda i, k: (0, 0)),
                pl.BlockSpec((f_in, f_out), lambda i, k: (0, 0)),  # W (resident)
                pl.BlockSpec((1, f_out), lambda i, k: (0, 0)),     # bias
            ],
            out_specs=pl.BlockSpec((tm, f_out), lambda i, k: (i, 0)),
            scratch_shapes=[pltpu.VMEM((tm, f_in), jnp.float32)],
        ),
        compiler_params=pltpu.CompilerParams(
            dimension_semantics=("parallel", "arbitrary"),
            vmem_limit_bytes=vmem_limit,
        ),
        cost_estimate=pl.CostEstimate(flops=flops,
                                      transcendentals=transcendentals,
                                      bytes_accessed=bytes_accessed),
    )(adj, h, w, b)


# ---------------------------------------------------------------------------
# Global mean pool:  out[g, :] = sum_n pool[g, n] * logp[n, :]   (bf16 MXU)
# ---------------------------------------------------------------------------
def _pool_kernel(pool_ref, logp_ref, out_ref):
    @pl.when(pl.program_id(0) == 0)
    def _():
        out_ref[...] = jnp.zeros_like(out_ref)

    out_ref[...] += jnp.dot(pool_ref[...], logp_ref[...],
                            preferred_element_type=jnp.float32)


def _global_mean_pool(pool, logp, tk, vmem_limit):
    g_pad, n_pad = pool.shape
    f_out = logp.shape[1]
    return pl.pallas_call(
        _pool_kernel,
        out_shape=jax.ShapeDtypeStruct((g_pad, f_out), jnp.float32),
        grid_spec=pltpu.PrefetchScalarGridSpec(
            num_scalar_prefetch=0,
            grid=(n_pad // tk,),
            in_specs=[
                pl.BlockSpec((g_pad, tk), lambda k: (0, k)),
                pl.BlockSpec((tk, f_out), lambda k: (k, 0)),
            ],
            out_specs=pl.BlockSpec((g_pad, f_out), lambda k: (0, 0)),
        ),
        compiler_params=pltpu.CompilerParams(
            dimension_semantics=("arbitrary",),
            vmem_limit_bytes=vmem_limit,
        ),
    )(pool, logp)


# ---------------------------------------------------------------------------
# Graph-matrix builders (padded, target dtype, built in one pass).
# ---------------------------------------------------------------------------
def build_norm_adj_padded(edge_index, num_nodes, n_pad, dtype):
    # PyG GCNConv: add self-loops, symmetric normalization.
    # Message flows src (edge_index[0]) -> dst (edge_index[1]): A[dst, src] = 1
    src, dst = edge_index[0], edge_index[1]
    adj = jnp.zeros((num_nodes, num_nodes), jnp.float32)
    adj = adj.at[dst, src].add(1.0)
    adj = adj + jnp.eye(num_nodes, dtype=jnp.float32)
    deg = adj.sum(axis=1)
    dinv = jnp.where(deg > 0, jax.lax.rsqrt(deg), 0.0)
    adj = dinv[:, None] * adj * dinv[None, :]
    out = jnp.zeros((n_pad, n_pad), dtype)
    return out.at[:num_nodes, :num_nodes].set(adj.astype(dtype))


def build_pool_padded(batch, num_graphs, n_pad, g_pad, dtype):
    onehot = jax.nn.one_hot(batch, num_graphs, dtype=jnp.float32).T  # [G, N]
    counts = jnp.maximum(onehot.sum(axis=1, keepdims=True), 1.0)
    pool = onehot / counts
    out = jnp.zeros((g_pad, n_pad), dtype)
    return out.at[:num_graphs, :batch.shape[0]].set(pool.astype(dtype))


# ---------------------------------------------------------------------------
# Forward pass.
# ---------------------------------------------------------------------------
def gcn_forward(x, edge_index, batch, num_graphs, w1, b1, w2, b2, *,
                force_tiled=False, tiles=None):
    """relu(adj @ x @ W1 + b1) -> adj @ . @ W2 + b2 -> log_softmax -> mean pool."""
    n, f_in = x.shape
    hidden = w1.shape[1]
    f_out = w2.shape[1]
    g = int(num_graphs)

    fp = _pad_to(f_in, LANE)
    hp = _pad_to(hidden, LANE)
    op = _pad_to(f_out, LANE)
    gp = _pad_to(g, 8)
    n_pad = _pad_to(n, LANE)          # always 128-multiple padding (no 512 jump)

    vlim = _vmem_limit_bytes()
    use_fused = (not force_tiled) and n_pad <= _FUSED_MAX_NPAD

    if use_fused:
        # Small graph: everything f32 and VMEM-resident; single launch.
        adj_p = build_norm_adj_padded(edge_index, n, n_pad, jnp.float32)
        pool_p = build_pool_padded(batch, g, n_pad, gp, jnp.float32)
        x_p = jnp.zeros((n_pad, fp), jnp.float32).at[:n, :f_in].set(x)
        w1_p = jnp.zeros((fp, hp), jnp.float32).at[:f_in, :hidden].set(w1)
        b1_p = jnp.zeros((1, hp), jnp.float32).at[0, :hidden].set(b1)
        w2_p = jnp.zeros((hp, op), jnp.float32).at[:hidden, :f_out].set(w2)
        b2_p = jnp.zeros((1, op), jnp.float32).at[0, :f_out].set(b2)
        out_p = _gcn_fused_small(adj_p, x_p, w1_p, b1_p, w2_p, b2_p, pool_p,
                                 f_out, vlim)
        return out_p[:g, :f_out]

    # Large graph: tiled, pipelined two-pass path, bf16 O(N^2) operands.
    if tiles is None:
        tm, tk = _pick_tiles(n_pad)
    else:
        tm, tk = tiles
    assert n_pad % tm == 0 and n_pad % tk == 0, (n_pad, tm, tk)

    adj_p = build_norm_adj_padded(edge_index, n, n_pad, jnp.bfloat16)
    pool_p = build_pool_padded(batch, g, n_pad, gp, jnp.bfloat16)
    x_p = jnp.zeros((n_pad, fp), jnp.bfloat16).at[:n, :f_in].set(
        x.astype(jnp.bfloat16))
    w1_p = jnp.zeros((fp, hp), jnp.bfloat16).at[:f_in, :hidden].set(
        w1.astype(jnp.bfloat16))
    b1_p = jnp.zeros((1, hp), jnp.float32).at[0, :hidden].set(b1)
    w2_p = jnp.zeros((hp, op), jnp.bfloat16).at[:hidden, :f_out].set(
        w2.astype(jnp.bfloat16))
    b2_p = jnp.zeros((1, op), jnp.float32).at[0, :f_out].set(b2)

    # Layer 1: ReLU(adj @ x @ W1 + b1); output bf16 (halves layer-2 traffic).
    h1 = _gcn_layer(adj_p, x_p, w1_p, b1_p, tm, tk,
                    activation="relu", n_valid_feat=hidden,
                    out_dtype=jnp.bfloat16, vmem_limit=vlim)
    # (dropout = identity in eval mode)
    # Layer 2: log_softmax(adj @ h1 @ W2 + b2); output bf16 feeds the pool MXU.
    logp = _gcn_layer(adj_p, h1, w2_p, b2_p, tm, tk,
                      activation="log_softmax", n_valid_feat=f_out,
                      out_dtype=jnp.bfloat16, vmem_limit=vlim)
    out_p = _global_mean_pool(pool_p, logp, tk, vlim)
    return out_p[:g, :f_out]


# ---------------------------------------------------------------------------
# Self-test.
# ---------------------------------------------------------------------------
if __name__ == "__main__":
    key = jax.random.PRNGKey(0)
    in_features, hidden, out_features = 3, 16, 6
    k1, k2, k3, k4 = jax.random.split(key, 4)

    w1 = jax.random.normal(k2, (in_features, hidden), jnp.float32) * (
        1.0 / jnp.sqrt(in_features))
    b1 = jnp.zeros((hidden,), jnp.float32)
    w2 = jax.random.normal(k3, (hidden, out_features), jnp.float32) * (
        1.0 / jnp.sqrt(hidden))
    b2 = jnp.zeros((out_features,), jnp.float32)

    def ring_graph(num_graphs, nodes_per_graph):
        edges = []
        for gg in range(num_graphs):
            base = gg * nodes_per_graph
            for i in range(nodes_per_graph):
                a, b = base + i, base + (i + 1) % nodes_per_graph
                edges.append((a, b))
                edges.append((b, a))
        ei = jnp.array(edges, dtype=jnp.int32).T                 # [2, E]
        batch = jnp.repeat(jnp.arange(num_graphs, dtype=jnp.int32),
                           nodes_per_graph)
        return ei, batch

    def reference(x, edge_index, batch, num_graphs):
        n = x.shape[0]
        adj = build_norm_adj_padded(edge_index, n, n, jnp.float32)
        pool = build_pool_padded(batch, num_graphs, n, num_graphs, jnp.float32)
        h = jnp.maximum(adj @ x @ w1 + b1, 0.0)
        z = adj @ h @ w2 + b2
        logp = z - jax.scipy.special.logsumexp(z, axis=1, keepdims=True)
        return pool @ logp

    # --- Test 1: tiny graph -> fused single-launch path (the module's case) --
    N1, G1 = 8, 2
    ei1, batch1 = ring_graph(G1, N1 // G1)
    x1 = jax.random.normal(k1, (N1, in_features), jnp.float32)
    out1 = gcn_forward(x1, ei1, batch1, G1, w1, b1, w2, b2)
    jax.block_until_ready(out1)
    ref1 = reference(x1, ei1, batch1, G1)
    assert out1.shape == (G1, out_features)
    assert jnp.allclose(out1, ref1, atol=2e-2, rtol=2e-2), (out1, ref1)

    # --- Test 2: larger graph, forced tiled/pipelined path (bf16 operands) ---
    N2, G2 = 300, 3
    ei2, batch2 = ring_graph(G2, N2 // G2)
    x2 = jax.random.normal(k4, (N2, in_features), jnp.float32)
    out2 = gcn_forward(x2, ei2, batch2, G2, w1, b1, w2, b2,
                       force_tiled=True, tiles=(128, 128))
    jax.block_until_ready(out2)
    ref2 = reference(x2, ei2, batch2, G2)
    assert out2.shape == (G2, out_features)
    assert jnp.allclose(out2, ref2, atol=3e-2, rtol=3e-2), (out2, ref2)

    print("KERNEL_OK")
</pallas_src>

<mosaic_0001>
module attributes {stable_mosaic.version = 11 : i64} {
  func.func @_fused_small_kernel(%arg0: i32, %arg1: memref<128x128xf32, #tpu.memory_space<vmem>>, %arg2: memref<128x128xf32, #tpu.memory_space<vmem>>, %arg3: memref<128x128xf32, #tpu.memory_space<vmem>>, %arg4: memref<1x128xf32, #tpu.memory_space<vmem>>, %arg5: memref<128x128xf32, #tpu.memory_space<vmem>>, %arg6: memref<1x128xf32, #tpu.memory_space<vmem>>, %arg7: memref<8x128xf32, #tpu.memory_space<vmem>>, %arg8: memref<8x128xf32, #tpu.memory_space<vmem>>) attributes {dimension_semantics = [#tpu.dimension_semantics<arbitrary>], iteration_bounds = array<i64: 1>, scalar_prefetch = 0 : i64, scratch_operands = 0 : i64, tpu.core_type = #tpu.core_type<tc>, window_params = [{pipeline_mode = #tpu.pipeline_mode<synchronous>, transform_indices = @transform_0, window_bounds = array<i64: 128, 128>}, {pipeline_mode = #tpu.pipeline_mode<synchronous>, transform_indices = @transform_1, window_bounds = array<i64: 128, 128>}, {pipeline_mode = #tpu.pipeline_mode<synchronous>, transform_indices = @transform_2, window_bounds = array<i64: 128, 128>}, {pipeline_mode = #tpu.pipeline_mode<synchronous>, transform_indices = @transform_3, window_bounds = array<i64: 1, 128>}, {pipeline_mode = #tpu.pipeline_mode<synchronous>, transform_indices = @transform_4, window_bounds = array<i64: 128, 128>}, {pipeline_mode = #tpu.pipeline_mode<synchronous>, transform_indices = @transform_5, window_bounds = array<i64: 1, 128>}, {pipeline_mode = #tpu.pipeline_mode<synchronous>, transform_indices = @transform_6, window_bounds = array<i64: 8, 128>}, {pipeline_mode = #tpu.pipeline_mode<synchronous>, transform_indices = @transform_7, window_bounds = array<i64: 8, 128>}]} {
    %c0 = arith.constant 0 : index
    %c0_0 = arith.constant 0 : index
    %0 = vector.load %arg1[%c0, %c0_0] : memref<128x128xf32, #tpu.memory_space<vmem>>, vector<128x128xf32>
    %c0_1 = arith.constant 0 : index
    %c0_2 = arith.constant 0 : index
    %1 = vector.load %arg2[%c0_1, %c0_2] : memref<128x128xf32, #tpu.memory_space<vmem>>, vector<128x128xf32>
    %cst = arith.constant dense<0.000000e+00> : vector<128x128xf32>
    %2 = tpu.matmul %0, %1, %cst {dimension_numbers = #tpu.dot_dimension_numbers<[1], [0], [0], [1], [0, 0, 1, 1], [], []>} : vector<128x128xf32>, vector<128x128xf32>, vector<128x128xf32> -> vector<128x128xf32>
    %c0_3 = arith.constant 0 : index
    %c0_4 = arith.constant 0 : index
    %3 = vector.load %arg3[%c0_3, %c0_4] : memref<128x128xf32, #tpu.memory_space<vmem>>, vector<128x128xf32>
    %cst_5 = arith.constant dense<0.000000e+00> : vector<128x128xf32>
    %4 = tpu.matmul %2, %3, %cst_5 {dimension_numbers = #tpu.dot_dimension_numbers<[1], [0], [0], [1], [0, 0, 1, 1], [], []>} : vector<128x128xf32>, vector<128x128xf32>, vector<128x128xf32> -> vector<128x128xf32>
    %c0_6 = arith.constant 0 : index
    %c0_7 = arith.constant 0 : index
    %5 = vector.load %arg4[%c0_6, %c0_7] : memref<1x128xf32, #tpu.memory_space<vmem>>, vector<1x128xf32>
    %6 = vector.broadcast %5 : vector<1x128xf32> to vector<128x128xf32>
    %7 = arith.addf %4, %6 : vector<128x128xf32>
    %cst_8 = arith.constant 0.000000e+00 : f32
    %8 = vector.broadcast %cst_8 : f32 to vector<128x128xf32>
    %9 = arith.maximumf %7, %8 : vector<128x128xf32>
    %cst_9 = arith.constant dense<0.000000e+00> : vector<128x128xf32>
    %10 = tpu.matmul %0, %9, %cst_9 {dimension_numbers = #tpu.dot_dimension_numbers<[1], [0], [0], [1], [0, 0, 1, 1], [], []>} : vector<128x128xf32>, vector<128x128xf32>, vector<128x128xf32> -> vector<128x128xf32>
    %c0_10 = arith.constant 0 : index
    %c0_11 = arith.constant 0 : index
    %11 = vector.load %arg5[%c0_10, %c0_11] : memref<128x128xf32, #tpu.memory_space<vmem>>, vector<128x128xf32>
    %cst_12 = arith.constant dense<0.000000e+00> : vector<128x128xf32>
    %12 = tpu.matmul %10, %11, %cst_12 {dimension_numbers = #tpu.dot_dimension_numbers<[1], [0], [0], [1], [0, 0, 1, 1], [], []>} : vector<128x128xf32>, vector<128x128xf32>, vector<128x128xf32> -> vector<128x128xf32>
    %c0_13 = arith.constant 0 : index
    %c0_14 = arith.constant 0 : index
    %13 = vector.load %arg6[%c0_13, %c0_14] : memref<1x128xf32, #tpu.memory_space<vmem>>, vector<1x128xf32>
    %14 = vector.broadcast %13 : vector<1x128xf32> to vector<128x128xf32>
    %15 = arith.addf %12, %14 : vector<128x128xf32>
    %16 = tpu.iota {dimensions = array<i32: 1>} : vector<128x128xi32>
    %c6_i32 = arith.constant 6 : i32
    %17 = vector.broadcast %c6_i32 : i32 to vector<128x128xi32>
    %18 = arith.cmpi slt, %16, %17 : vector<128x128xi32>
    %cst_15 = arith.constant -1.000000e+30 : f32
    %19 = vector.broadcast %cst_15 : f32 to vector<128x128xf32>
    %20 = arith.select %18, %15, %19 : vector<128x128xi1>, vector<128x128xf32>
    %cst_16 = arith.constant dense<0xFF800000> : vector<128xf32>
    %21 = vector.multi_reduction <maximumf>, %20, %cst_16 [1] : vector<128x128xf32> to vector<128xf32>
    %22 = vector.shape_cast %21 : vector<128xf32> to vector<128x1xf32>
    %23 = vector.broadcast %22 : vector<128x1xf32> to vector<128x128xf32>
    %24 = arith.subf %20, %23 : vector<128x128xf32>
    %25 = math.exp %24 : vector<128x128xf32>
    %cst_17 = arith.constant 0.000000e+00 : f32
    %26 = vector.broadcast %cst_17 : f32 to vector<128x128xf32>
    %27 = arith.select %18, %25, %26 : vector<128x128xi1>, vector<128x128xf32>
    %cst_18 = arith.constant dense<0.000000e+00> : vector<128xf32>
    %28 = vector.multi_reduction <add>, %27, %cst_18 [1] : vector<128x128xf32> to vector<128xf32>
    %29 = vector.shape_cast %28 : vector<128xf32> to vector<128x1xf32>
    %30 = math.log %29 : vector<128x1xf32>
    %31 = vector.broadcast %22 : vector<128x1xf32> to vector<128x128xf32>
    %32 = arith.subf %20, %31 : vector<128x128xf32>
    %33 = vector.broadcast %30 : vector<128x1xf32> to vector<128x128xf32>
    %34 = arith.subf %32, %33 : vector<128x128xf32>
    %cst_19 = arith.constant 0.000000e+00 : f32
    %35 = vector.broadcast %cst_19 : f32 to vector<128x128xf32>
    %36 = arith.select %18, %34, %35 : vector<128x128xi1>, vector<128x128xf32>
    %c0_20 = arith.constant 0 : index
    %c0_21 = arith.constant 0 : index
    %37 = vector.load %arg7[%c0_20, %c0_21] : memref<8x128xf32, #tpu.memory_space<vmem>>, vector<8x128xf32>
    %cst_22 = arith.constant dense<0.000000e+00> : vector<8x128xf32>
    %38 = tpu.matmul %37, %36, %cst_22 {dimension_numbers = #tpu.dot_dimension_numbers<[1], [0], [0], [1], [0, 0, 1, 1], [], []>} : vector<8x128xf32>, vector<128x128xf32>, vector<8x128xf32> -> vector<8x128xf32>
    %c0_23 = arith.constant 0 : index
    %c0_24 = arith.constant 0 : index
    %39 = vector.load %arg8[%c0_23, %c0_24] : memref<8x128xf32, #tpu.memory_space<vmem>>, vector<8x128xf32>
    tpu.vector_store %arg8[%c0_23, %c0_24], %38 {strides = array<i32>} : memref<8x128xf32, #tpu.memory_space<vmem>>, vector<8x128xf32>,
    return
  }
  func.func @transform_0(%arg0: i32) -> (i32, i32) {
    %c0_i32 = arith.constant 0 : i32
    %c0_i32_0 = arith.constant 0 : i32
    %c0_i32_1 = arith.constant 0 : i32
    return %c0_i32, %c0_i32_0 : i32, i32
  }
  func.func @transform_1(%arg0: i32) -> (i32, i32) {
    %c0_i32 = arith.constant 0 : i32
    %c0_i32_0 = arith.constant 0 : i32
    %c0_i32_1 = arith.constant 0 : i32
    return %c0_i32, %c0_i32_0 : i32, i32
  }
  func.func @transform_2(%arg0: i32) -> (i32, i32) {
    %c0_i32 = arith.constant 0 : i32
    %c0_i32_0 = arith.constant 0 : i32
    %c0_i32_1 = arith.constant 0 : i32
    return %c0_i32, %c0_i32_0 : i32, i32
  }
  func.func @transform_3(%arg0: i32) -> (i32, i32) {
    %c0_i32 = arith.constant 0 : i32
    %c0_i32_0 = arith.constant 0 : i32
    %c0_i32_1 = arith.constant 0 : i32
    return %c0_i32, %c0_i32_0 : i32, i32
  }
  func.func @transform_4(%arg0: i32) -> (i32, i32) {
    %c0_i32 = arith.constant 0 : i32
    %c0_i32_0 = arith.constant 0 : i32
    %c0_i32_1 = arith.constant 0 : i32
    return %c0_i32, %c0_i32_0 : i32, i32
  }
  func.func @transform_5(%arg0: i32) -> (i32, i32) {
    %c0_i32 = arith.constant 0 : i32
    %c0_i32_0 = arith.constant 0 : i32
    %c0_i32_1 = arith.constant 0 : i32
    return %c0_i32, %c0_i32_0 : i32, i32
  }
  func.func @transform_6(%arg0: i32) -> (i32, i32) {
    %c0_i32 = arith.constant 0 : i32
    %c0_i32_0 = arith.constant 0 : i32
    %c0_i32_1 = arith.constant 0 : i32
    return %c0_i32, %c0_i32_0 : i32, i32
  }
  func.func @transform_7(%arg0: i32) -> (i32, i32) {
    %c0_i32 = arith.constant 0 : i32
    %c0_i32_0 = arith.constant 0 : i32
    %c0_i32_1 = arith.constant 0 : i32
    return %c0_i32, %c0_i32_0 : i32, i32
  }
}

</mosaic_0001>

<llo_original>
// kernel: tpu_custom_call.1
$region0: #{tpu_custom_call.1}
  #allocation0 [shape = 'u32[]', space=smem, size = 0x4, offset = 0x4, fixed_abs, tag = 'smem constant byte address 0x4 - core index']
  #allocation1 [shape = 'u32[144,128]{1,0:T(1,128)}', space=vmem, size = 0x12000, scoped, tag = 'internal scratch']
  %s0 = inlined_call_operand.hbm [shape: f32[128,128], index: 0, kind: input, shape index: {}]
  %s1 = inlined_call_operand.hbm [shape: f32[128,128], index: 1, kind: input, shape index: {}]
  %s2 = inlined_call_operand.hbm [shape: f32[128,128], index: 2, kind: input, shape index: {}]
  %s3 = inlined_call_operand.vmem [shape: f32[1,128], index: 3, kind: input, shape index: {}]
  %s4 = inlined_call_operand.hbm [shape: f32[128,128], index: 4, kind: input, shape index: {}]
  %s5 = inlined_call_operand.vmem [shape: f32[1,128], index: 5, kind: input, shape index: {}]
  %s6 = inlined_call_operand.vmem [shape: f32[8,128], index: 6, kind: input, shape index: {}]
  %s7 = inlined_call_operand.hbm [shape: f32[8,128], index: 7, kind: output, shape index: {}]
  %s8 = sld [smem:[#allocation0]]
  $region54: #{tpu_custom_call.1} parent=0
    _
  %s10 = ssub.s32 1, %s8
  %s11 = scalar_select 0, %s10, %s8
  $region1: #{tpu_custom_call.1} parent=0
    #allocation2 [shape = 'u8[65536]{0}', space=vmem, size = 0x10000, scoped, tag = 'input window, operand 0, single buffered']
    #allocation3 [shape = 's32[1]{0}', space=sflag, size = 0x4, scoped, tag = 'scoped memory for tpu_custom_call.1']
    #allocation4 [shape = 's32[1]{0}', space=sflag, size = 0x4, scoped, tag = 'scoped memory for tpu_custom_call.1']
    #allocation5 [shape = 'u8[65536]{0}', space=vmem, size = 0x10000, scoped, tag = 'input window, operand 1, single buffered']
    #allocation6 [shape = 's32[1]{0}', space=sflag, size = 0x4, scoped, tag = 'scoped memory for tpu_custom_call.1']
    #allocation7 [shape = 'u8[65536]{0}', space=vmem, size = 0x10000, scoped, tag = 'input window, operand 2, single buffered']
    #allocation8 [shape = 'u8[65536]{0}', space=vmem, size = 0x10000, scoped, tag = 'input window, operand 4, single buffered']
    #allocation9 [shape = 's32[1]{0}', space=sflag, size = 0x4, scoped, tag = 'scoped memory for tpu_custom_call.1']
    #allocation10 [shape = 'u8[4096]{0}', space=vmem, size = 0x1000, scoped, tag = 'output window, operand 0, single buffered']
    %12 = vsyncpa [#allocation3], 0
    %13 = vsyncpa [#allocation6], 0
    %14 = vsyncpa [#allocation9], 0
    %15 = vsyncpa [#allocation4], 0
    // Predicated region
    $region2: #{tpu_custom_call.1} parent=1 // pred_check
      _
    $region3: #{tpu_custom_call.1} parent=1 // pred_check_branch
      %17 = sbr.rel (0) target = $region5
    $region4: #{tpu_custom_call.1} parent=1 // pred_region
      %s19 = ssub.s32 2048, 2048
      %20 = vsyncadd [#allocation3], %s19
      %s21 = sshll.u32 [#allocation2], 4
      %s22 = int_to_ptr.vmem [resolvable:$true] %s21
      %27 = dma.hbm_to_vmem [thread:$0]  %s0, 2048, %s22, [#allocation3], 128, 128, 8
    $region5: #{tpu_custom_call.1} parent=1 // pred_fallthru
      _
    // Predicated region
    $region6: #{tpu_custom_call.1} parent=1 // pred_check
      _
    $region7: #{tpu_custom_call.1} parent=1 // pred_check_branch
      %29 = sbr.rel (0) target = $region9
    $region8: #{tpu_custom_call.1} parent=1 // pred_region
      %s31 = ssub.s32 2048, 2048
      %32 = vsyncadd [#allocation6], %s31
      %s33 = sshll.u32 [#allocation5], 4
      %s34 = int_to_ptr.vmem [resolvable:$true] %s33
      %39 = dma.hbm_to_vmem [thread:$0]  %s1, 2048, %s34, [#allocation6], 128, 128, 8
    $region9: #{tpu_custom_call.1} parent=1 // pred_fallthru
      _
    // Predicated region
    $region10: #{tpu_custom_call.1} parent=1 // pred_check
      _
    $region11: #{tpu_custom_call.1} parent=1 // pred_check_branch
      %41 = sbr.rel (0) target = $region13
    $region12: #{tpu_custom_call.1} parent=1 // pred_region
      %s43 = ssub.s32 2048, 2048
      %44 = vsyncadd [#allocation6], %s43
      %s45 = sshll.u32 [#allocation7], 4
      %s46 = int_to_ptr.vmem [resolvable:$true] %s45
      %51 = dma.hbm_to_vmem [thread:$0]  %s2, 2048, %s46, [#allocation6], 128, 128, 8
    $region13: #{tpu_custom_call.1} parent=1 // pred_fallthru
      _
    // Predicated region
    $region14: #{tpu_custom_call.1} parent=1 // pred_check
      _
    $region15: #{tpu_custom_call.1} parent=1 // pred_check_branch
      %53 = sbr.rel (0) target = $region17
    $region16: #{tpu_custom_call.1} parent=1 // pred_region
      _
    $region17: #{tpu_custom_call.1} parent=1 // pred_fallthru
      _
    // Predicated region
    $region18: #{tpu_custom_call.1} parent=1 // pred_check
      _
    $region19: #{tpu_custom_call.1} parent=1 // pred_check_branch
      %55 = sbr.rel (0) target = $region21
    $region20: #{tpu_custom_call.1} parent=1 // pred_region
      %s57 = ssub.s32 2048, 2048
      %58 = vsyncadd [#allocation9], %s57
      %s59 = sshll.u32 [#allocation8], 4
      %s60 = int_to_ptr.vmem [resolvable:$true] %s59
      %65 = dma.hbm_to_vmem [thread:$0]  %s4, 2048, %s60, [#allocation9], 128, 128, 8
    $region21: #{tpu_custom_call.1} parent=1 // pred_fallthru
      _
    // Predicated region
    $region22: #{tpu_custom_call.1} parent=1 // pred_check
      _
    $region23: #{tpu_custom_call.1} parent=1 // pred_check_branch
      %67 = sbr.rel (0) target = $region25
    $region24: #{tpu_custom_call.1} parent=1 // pred_region
      _
    $region25: #{tpu_custom_call.1} parent=1 // pred_fallthru
      _
    // Predicated region
    $region26: #{tpu_custom_call.1} parent=1 // pred_check
      _
    $region27: #{tpu_custom_call.1} parent=1 // pred_check_branch
      %69 = sbr.rel (0) target = $region29
    $region28: #{tpu_custom_call.1} parent=1 // pred_region
      _
    $region29: #{tpu_custom_call.1} parent=1 // pred_fallthru
      _
    // Predicated region
    $region30: #{tpu_custom_call.1} parent=1 // pred_check
      _
    $region31: #{tpu_custom_call.1} parent=1 // pred_check_branch
      %71 = sbr.rel (0) target = $region33
    $region32: #{tpu_custom_call.1} parent=1 // pred_region
      %72 = dma.done [#allocation3], 2048
    $region33: #{tpu_custom_call.1} parent=1 // pred_fallthru
      _
    // Predicated region
    $region34: #{tpu_custom_call.1} parent=1 // pred_check
      _
    $region35: #{tpu_custom_call.1} parent=1 // pred_check_branch
      %74 = sbr.rel (0) target = $region37
    $region36: #{tpu_custom_call.1} parent=1 // pred_region
      %75 = dma.done [#allocation6], 2048
    $region37: #{tpu_custom_call.1} parent=1 // pred_fallthru
      _
    // Predicated region
    $region38: #{tpu_custom_call.1} parent=1 // pred_check
      _
    $region39: #{tpu_custom_call.1} parent=1 // pred_check_branch
      %77 = sbr.rel (0) target = $region41
    $region40: #{tpu_custom_call.1} parent=1 // pred_region
      %78 = dma.done [#allocation6], 2048
    $region41: #{tpu_custom_call.1} parent=1 // pred_fallthru
      _
    // Predicated region
    $region42: #{tpu_custom_call.1} parent=1 // pred_check
      _
    $region43: #{tpu_custom_call.1} parent=1 // pred_check_branch
      %80 = sbr.rel (0) target = $region45
    $region44: #{tpu_custom_call.1} parent=1 // pred_region
      %81 = dma.done [#allocation9], 2048
    $region45: #{tpu_custom_call.1} parent=1 // pred_fallthru
      _
    %v82 = vld [vmem:[#allocation2] sm:$0xff]
    %v83 = vld [vmem:[#allocation2 + $0x8] sm:$0xff]
    %v84 = vld [vmem:[#allocation2 + $0x10] sm:$0xff]
    %v85 = vld [vmem:[#allocation2 + $0x18] sm:$0xff]
    %v86 = vld [vmem:[#allocation2 + $0x20] sm:$0xff]
    %v87 = vld [vmem:[#allocation2 + $0x28] sm:$0xff]
    %v88 = vld [vmem:[#allocation2 + $0x30] sm:$0xff]
    %v89 = vld [vmem:[#allocation2 + $0x38] sm:$0xff]
    %v90 = vld [vmem:[#allocation2 + $0x40] sm:$0xff]
    %v91 = vld [vmem:[#allocation2 + $0x48] sm:$0xff]
    %v92 = vld [vmem:[#allocation2 + $0x50] sm:$0xff]
    %v93 = vld [vmem:[#allocation2 + $0x58] sm:$0xff]
    %v94 = vld [vmem:[#allocation2 + $0x60] sm:$0xff]
    %v95 = vld [vmem:[#allocation2 + $0x68] sm:$0xff]
    %v96 = vld [vmem:[#allocation2 + $0x70] sm:$0xff]
    %v97 = vld [vmem:[#allocation2 + $0x78] sm:$0xff]
    %v98 = vld [vmem:[#allocation5] sm:$0xff]
    %v99 = vld [vmem:[#allocation5 + $0x8] sm:$0xff]
    %v100 = vld [vmem:[#allocation5 + $0x10] sm:$0xff]
    %v101 = vld [vmem:[#allocation5 + $0x18] sm:$0xff]
    %v102 = vld [vmem:[#allocation5 + $0x20] sm:$0xff]
    %v103 = vld [vmem:[#allocation5 + $0x28] sm:$0xff]
    %v104 = vld [vmem:[#allocation5 + $0x30] sm:$0xff]
    %v105 = vld [vmem:[#allocation5 + $0x38] sm:$0xff]
    %v106 = vld [vmem:[#allocation5 + $0x40] sm:$0xff]
    %v107 = vld [vmem:[#allocation5 + $0x48] sm:$0xff]
    %v108 = vld [vmem:[#allocation5 + $0x50] sm:$0xff]
    %v109 = vld [vmem:[#allocation5 + $0x58] sm:$0xff]
    %v110 = vld [vmem:[#allocation5 + $0x60] sm:$0xff]
    %v111 = vld [vmem:[#allocation5 + $0x68] sm:$0xff]
    %v112 = vld [vmem:[#allocation5 + $0x70] sm:$0xff]
    %v113 = vld [vmem:[#allocation5 + $0x78] sm:$0xff]
    %114 = vmatprep.subr.mxu0 0.0
    %115 = vmatpush1.msra.mxu0 %v113
    %116 = vmatprep.subr.mxu0 0.0
    %117 = vmatpush1.msra.mxu0 %v112
    %118 = vmatprep.subr.mxu0 0.0
    %119 = vmatpush1.msra.mxu0 %v111
    %120 = vmatprep.subr.mxu0 0.0
    %121 = vmatpush1.msra.mxu0 %v110
    %122 = vmatprep.subr.mxu0 0.0
    %123 = vmatpush1.msra.mxu0 %v109
    %124 = vmatprep.subr.mxu0 0.0
    %125 = vmatpush1.msra.mxu0 %v108
    %126 = vmatprep.subr.mxu0 0.0
    %127 = vmatpush1.msra.mxu0 %v107
    %128 = vmatprep.subr.mxu0 0.0
    %129 = vmatpush1.msra.mxu0 %v106
    %130 = vmatprep.subr.mxu0 0.0
    %131 = vmatpush1.msra.mxu0 %v105
    %132 = vmatprep.subr.mxu0 0.0
    %133 = vmatpush1.msra.mxu0 %v104
    %134 = vmatprep.subr.mxu0 0.0
    %135 = vmatpush1.msra.mxu0 %v103
    %136 = vmatprep.subr.mxu0 0.0
    %137 = vmatpush1.msra.mxu0 %v102
    %138 = vmatprep.subr.mxu0 0.0
    %139 = vmatpush1.msra.mxu0 %v101
    %140 = vmatprep.subr.mxu0 0.0
    %141 = vmatpush1.msra.mxu0 %v100
    %142 = vmatprep.subr.mxu0 0.0
    %143 = vmatpush1.msra.mxu0 %v99
    %144 = vmatprep.subr.mxu0 0.0
    %145 = vmatpush1.msra.mxu0 %v98
    %146 = vmatprep.subr.mxu0 0.0
    %147 = vmatpush2.msra.mxu0 0.0
    %148 = vmatprep.subr.mxu0 0.0
    %149 = vmatpush2.msra.mxu0 0.0
    %150 = vmatprep.subr.mxu0 0.0
    %151 = vmatpush2.msra.mxu0 0.0
    %152 = vmatprep.subr.mxu0 0.0
    %153 = vmatpush2.msra.mxu0 0.0
    %154 = vmatprep.subr.mxu0 0.0
    %155 = vmatpush2.msra.mxu0 0.0
    %156 = vmatprep.subr.mxu0 0.0
    %157 = vmatpush2.msra.mxu0 0.0
    %158 = vmatprep.subr.mxu0 0.0
    %159 = vmatpush2.msra.mxu0 0.0
    %160 = vmatprep.subr.mxu0 0.0
    %161 = vmatpush2.msra.mxu0 0.0
    %162 = vmatprep.subr.mxu0 0.0
    %163 = vmatpush2.msra.mxu0 0.0
    %164 = vmatprep.subr.mxu0 0.0
    %165 = vmatpush2.msra.mxu0 0.0
    %166 = vmatprep.subr.mxu0 0.0
    %167 = vmatpush2.msra.mxu0 0.0
    %168 = vmatprep.subr.mxu0 0.0
    %169 = vmatpush2.msra.mxu0 0.0
    %170 = vmatprep.subr.mxu0 0.0
    %171 = vmatpush2.msra.mxu0 0.0
    %172 = vmatprep.subr.mxu0 0.0
    %173 = vmatpush2.msra.mxu0 0.0
    %174 = vmatprep.subr.mxu0 0.0
    %175 = vmatpush2.msra.mxu0 0.0
    %176 = vmatprep.subr.mxu0 0.0
    %177 = vmatpush2.msra.mxu0 0.0
    %178 = vmatprep.mubr.f32.mxu0 0.0
    %179 = vmatmul.mubr.f32.gmra.mxu0 %v82
    %v180 = vpop.f32.mrf.mxu0
    %v181 = vadd.f32 0.0, %v180
    %v182 = vpop.f32.mrf.mxu0
    %183 = vmatprep.mubr.f32.mxu0 0.0
    %184 = vmatmul.mubr.f32.gmra.mxu0 %v83
    %v185 = vpop.f32.mrf.mxu0
    %v186 = vadd.f32 0.0, %v185
    %v187 = vpop.f32.mrf.mxu0
    %188 = vmatprep.mubr.f32.mxu0 0.0
    %189 = vmatmul.mubr.f32.gmra.mxu0 %v84
    %v190 = vpop.f32.mrf.mxu0
    %v191 = vadd.f32 0.0, %v190
    %v192 = vpop.f32.mrf.mxu0
    %193 = vmatprep.mubr.f32.mxu0 0.0
    %194 = vmatmul.mubr.f32.gmra.mxu0 %v85
    %v195 = vpop.f32.mrf.mxu0
    %v196 = vadd.f32 0.0, %v195
    %v197 = vpop.f32.mrf.mxu0
    %198 = vmatprep.mubr.f32.mxu0 0.0
    %199 = vmatmul.mubr.f32.gmra.mxu0 %v86
    %v200 = vpop.f32.mrf.mxu0
    %v201 = vadd.f32 0.0, %v200
    %v202 = vpop.f32.mrf.mxu0
    %203 = vmatprep.mubr.f32.mxu0 0.0
    %204 = vmatmul.mubr.f32.gmra.mxu0 %v87
    %v205 = vpop.f32.mrf.mxu0
    %v206 = vadd.f32 0.0, %v205
    %v207 = vpop.f32.mrf.mxu0
    %208 = vmatprep.mubr.f32.mxu0 0.0
    %209 = vmatmul.mubr.f32.gmra.mxu0 %v88
    %v210 = vpop.f32.mrf.mxu0
    %v211 = vadd.f32 0.0, %v210
    %v212 = vpop.f32.mrf.mxu0
    %213 = vmatprep.mubr.f32.mxu0 0.0
    %214 = vmatmul.mubr.f32.gmra.mxu0 %v89
    %v215 = vpop.f32.mrf.mxu0
    %v216 = vadd.f32 0.0, %v215
    %v217 = vpop.f32.mrf.mxu0
    %218 = vmatprep.mubr.f32.mxu0 0.0
    %219 = vmatmul.mubr.f32.gmra.mxu0 %v90
    %v220 = vpop.f32.mrf.mxu0
    %v221 = vadd.f32 0.0, %v220
    %v222 = vpop.f32.mrf.mxu0
    %223 = vmatprep.mubr.f32.mxu0 0.0
    %224 = vmatmul.mubr.f32.gmra.mxu0 %v91
    %v225 = vpop.f32.mrf.mxu0
    %v226 = vadd.f32 0.0, %v225
    %v227 = vpop.f32.mrf.mxu0
    %228 = vmatprep.mubr.f32.mxu0 0.0
    %229 = vmatmul.mubr.f32.gmra.mxu0 %v92
    %v230 = vpop.f32.mrf.mxu0
    %v231 = vadd.f32 0.0, %v230
    %v232 = vpop.f32.mrf.mxu0
    %233 = vmatprep.mubr.f32.mxu0 0.0
    %234 = vmatmul.mubr.f32.gmra.mxu0 %v93
    %v235 = vpop.f32.mrf.mxu0
    %v236 = vadd.f32 0.0, %v235
    %v237 = vpop.f32.mrf.mxu0
    %238 = vmatprep.mubr.f32.mxu0 0.0
    %239 = vmatmul.mubr.f32.gmra.mxu0 %v94
    %v240 = vpop.f32.mrf.mxu0
    %v241 = vadd.f32 0.0, %v240
    %v242 = vpop.f32.mrf.mxu0
    %243 = vmatprep.mubr.f32.mxu0 0.0
    %244 = vmatmul.mubr.f32.gmra.mxu0 %v95
    %v245 = vpop.f32.mrf.mxu0
    %v246 = vadd.f32 0.0, %v245
    %v247 = vpop.f32.mrf.mxu0
    %248 = vmatprep.mubr.f32.mxu0 0.0
    %249 = vmatmul.mubr.f32.gmra.mxu0 %v96
    %v250 = vpop.f32.mrf.mxu0
    %v251 = vadd.f32 0.0, %v250
    %v252 = vpop.f32.mrf.mxu0
    %253 = vmatprep.mubr.f32.mxu0 0.0
    %254 = vmatmul.mubr.f32.gmra.mxu0 %v97
    %v255 = vpop.f32.mrf.mxu0
    %v256 = vadd.f32 0.0, %v255
    %v257 = vpop.f32.mrf.mxu0
    %258 = vdwg.mxu0
    %v259 = vld [vmem:[#allocation7] sm:$0xff]
    %v260 = vld [vmem:[#allocation7 + $0x8] sm:$0xff]
    %v261 = vld [vmem:[#allocation7 + $0x10] sm:$0xff]
    %v262 = vld [vmem:[#allocation7 + $0x18] sm:$0xff]
    %v263 = vld [vmem:[#allocation7 + $0x20] sm:$0xff]
    %v264 = vld [vmem:[#allocation7 + $0x28] sm:$0xff]
    %v265 = vld [vmem:[#allocation7 + $0x30] sm:$0xff]
    %v266 = vld [vmem:[#allocation7 + $0x38] sm:$0xff]
    %v267 = vld [vmem:[#allocation7 + $0x40] sm:$0xff]
    %v268 = vld [vmem:[#allocation7 + $0x48] sm:$0xff]
    %v269 = vld [vmem:[#allocation7 + $0x50] sm:$0xff]
    %v270 = vld [vmem:[#allocation7 + $0x58] sm:$0xff]
    %v271 = vld [vmem:[#allocation7 + $0x60] sm:$0xff]
    %v272 = vld [vmem:[#allocation7 + $0x68] sm:$0xff]
    %v273 = vld [vmem:[#allocation7 + $0x70] sm:$0xff]
    %v274 = vld [vmem:[#allocation7 + $0x78] sm:$0xff]
    %v275 = vld [vmem:[%s3] sm:$0x1]
    %v277 = vlaneseq
    %v278 = vshrl.u32 %v277, 7
    %v279 = vsub.s32 0, %v278
    %v280 = vrot.slane %v275, %v279
    %282 = vmatprep.subr.mxu0 0.0
    %283 = vmatpush1.msra.mxu0 %v274
    %284 = vmatprep.subr.mxu0 0.0
    %285 = vmatpush1.msra.mxu0 %v273
    %286 = vmatprep.subr.mxu0 0.0
    %287 = vmatpush1.msra.mxu0 %v272
    %288 = vmatprep.subr.mxu0 0.0
    %289 = vmatpush1.msra.mxu0 %v271
    %290 = vmatprep.subr.mxu0 0.0
    %291 = vmatpush1.msra.mxu0 %v270
    %292 = vmatprep.subr.mxu0 0.0
    %293 = vmatpush1.msra.mxu0 %v269
    %294 = vmatprep.subr.mxu0 0.0
    %295 = vmatpush1.msra.mxu0 %v268
    %296 = vmatprep.subr.mxu0 0.0
    %297 = vmatpush1.msra.mxu0 %v267
    %298 = vmatprep.subr.mxu0 0.0
    %299 = vmatpush1.msra.mxu0 %v266
    %300 = vmatprep.subr.mxu0 0.0
    %301 = vmatpush1.msra.mxu0 %v265
    %302 = vmatprep.subr.mxu0 0.0
    %303 = vmatpush1.msra.mxu0 %v264
    %304 = vmatprep.subr.mxu0 0.0
    %305 = vmatpush1.msra.mxu0 %v263
    %306 = vmatprep.subr.mxu0 0.0
    %307 = vmatpush1.msra.mxu0 %v262
    %308 = vmatprep.subr.mxu0 0.0
    %309 = vmatpush1.msra.mxu0 %v261
    %310 = vmatprep.subr.mxu0 0.0
    %311 = vmatpush1.msra.mxu0 %v260
    %312 = vmatprep.subr.mxu0 0.0
    %313 = vmatpush1.msra.mxu0 %v259
    %314 = vmatprep.subr.mxu0 0.0
    %315 = vmatpush2.msra.mxu0 0.0
    %316 = vmatprep.subr.mxu0 0.0
    %317 = vmatpush2.msra.mxu0 0.0
    %318 = vmatprep.subr.mxu0 0.0
    %319 = vmatpush2.msra.mxu0 0.0
    %320 = vmatprep.subr.mxu0 0.0
    %321 = vmatpush2.msra.mxu0 0.0
    %322 = vmatprep.subr.mxu0 0.0
    %323 = vmatpush2.msra.mxu0 0.0
    %324 = vmatprep.subr.mxu0 0.0
    %325 = vmatpush2.msra.mxu0 0.0
    %326 = vmatprep.subr.mxu0 0.0
    %327 = vmatpush2.msra.mxu0 0.0
    %328 = vmatprep.subr.mxu0 0.0
    %329 = vmatpush2.msra.mxu0 0.0
    %330 = vmatprep.subr.mxu0 0.0
    %331 = vmatpush2.msra.mxu0 0.0
    %332 = vmatprep.subr.mxu0 0.0
    %333 = vmatpush2.msra.mxu0 0.0
    %334 = vmatprep.subr.mxu0 0.0
    %335 = vmatpush2.msra.mxu0 0.0
    %336 = vmatprep.subr.mxu0 0.0
    %337 = vmatpush2.msra.mxu0 0.0
    %338 = vmatprep.subr.mxu0 0.0
    %339 = vmatpush2.msra.mxu0 0.0
    %340 = vmatprep.subr.mxu0 0.0
    %341 = vmatpush2.msra.mxu0 0.0
    %342 = vmatprep.subr.mxu0 0.0
    %343 = vmatpush2.msra.mxu0 0.0
    %344 = vmatprep.subr.mxu0 0.0
    %345 = vmatpush2.msra.mxu0 0.0
    %346 = vmatprep.mubr.f32.mxu0 0.0
    %347 = vmatmul.mubr.f32.gmra.mxu0 %v181
    %v348 = vpop.f32.mrf.mxu0
    %v349 = vadd.f32 %v280, %v348
    %v350 = vpop.f32.mrf.mxu0
    %351 = vmatprep.mubr.f32.mxu0 0.0
    %352 = vmatmul.mubr.f32.gmra.mxu0 %v186
    %v353 = vpop.f32.mrf.mxu0
    %v354 = vadd.f32 %v280, %v353
    %v355 = vpop.f32.mrf.mxu0
    %356 = vmatprep.mubr.f32.mxu0 0.0
    %357 = vmatmul.mubr.f32.gmra.mxu0 %v191
    %v358 = vpop.f32.mrf.mxu0
    %v359 = vadd.f32 %v280, %v358
    %v360 = vpop.f32.mrf.mxu0
    %361 = vmatprep.mubr.f32.mxu0 0.0
    %362 = vmatmul.mubr.f32.gmra.mxu0 %v196
    %v363 = vpop.f32.mrf.mxu0
    %v364 = vadd.f32 %v280, %v363
    %v365 = vpop.f32.mrf.mxu0
    %366 = vmatprep.mubr.f32.mxu0 0.0
    %367 = vmatmul.mubr.f32.gmra.mxu0 %v201
    %v368 = vpop.f32.mrf.mxu0
    %v369 = vadd.f32 %v280, %v368
    %v370 = vpop.f32.mrf.mxu0
    %371 = vmatprep.mubr.f32.mxu0 0.0
    %372 = vmatmul.mubr.f32.gmra.mxu0 %v206
    %v373 = vpop.f32.mrf.mxu0
    %v374 = vadd.f32 %v280, %v373
    %v375 = vpop.f32.mrf.mxu0
    %376 = vmatprep.mubr.f32.mxu0 0.0
    %377 = vmatmul.mubr.f32.gmra.mxu0 %v211
    %v378 = vpop.f32.mrf.mxu0
    %v379 = vadd.f32 %v280, %v378
    %v380 = vpop.f32.mrf.mxu0
    %381 = vmatprep.mubr.f32.mxu0 0.0
    %382 = vmatmul.mubr.f32.gmra.mxu0 %v216
    %v383 = vpop.f32.mrf.mxu0
    %v384 = vadd.f32 %v280, %v383
    %v385 = vpop.f32.mrf.mxu0
    %386 = vmatprep.mubr.f32.mxu0 0.0
    %387 = vmatmul.mubr.f32.gmra.mxu0 %v221
    %v388 = vpop.f32.mrf.mxu0
    %v389 = vadd.f32 %v280, %v388
    %v390 = vpop.f32.mrf.mxu0
    %391 = vmatprep.mubr.f32.mxu0 0.0
    %392 = vmatmul.mubr.f32.gmra.mxu0 %v226
    %v393 = vpop.f32.mrf.mxu0
    %v394 = vadd.f32 %v280, %v393
    %v395 = vpop.f32.mrf.mxu0
    %396 = vmatprep.mubr.f32.mxu0 0.0
    %397 = vmatmul.mubr.f32.gmra.mxu0 %v231
    %v398 = vpop.f32.mrf.mxu0
    %v399 = vadd.f32 %v280, %v398
    %v400 = vpop.f32.mrf.mxu0
    %401 = vmatprep.mubr.f32.mxu0 0.0
    %402 = vmatmul.mubr.f32.gmra.mxu0 %v236
    %v403 = vpop.f32.mrf.mxu0
    %v404 = vadd.f32 %v280, %v403
    %v405 = vpop.f32.mrf.mxu0
    %406 = vmatprep.mubr.f32.mxu0 0.0
    %407 = vmatmul.mubr.f32.gmra.mxu0 %v241
    %v408 = vpop.f32.mrf.mxu0
    %v409 = vadd.f32 %v280, %v408
    %v410 = vpop.f32.mrf.mxu0
    %411 = vmatprep.mubr.f32.mxu0 0.0
    %412 = vmatmul.mubr.f32.gmra.mxu0 %v246
    %v413 = vpop.f32.mrf.mxu0
    %v414 = vadd.f32 %v280, %v413
    %v415 = vpop.f32.mrf.mxu0
    %416 = vmatprep.mubr.f32.mxu0 0.0
    %417 = vmatmul.mubr.f32.gmra.mxu0 %v251
    %v418 = vpop.f32.mrf.mxu0
    %v419 = vadd.f32 %v280, %v418
    %v420 = vpop.f32.mrf.mxu0
    %421 = vmatprep.mubr.f32.mxu0 0.0
    %422 = vmatmul.mubr.f32.gmra.mxu0 %v256
    %v423 = vpop.f32.mrf.mxu0
    %v424 = vadd.f32 %v280, %v423
    %v425 = vpop.f32.mrf.mxu0
    %426 = vdwg.mxu0
    %v427 = vmax.f32 %v349, 0.0
    %v428 = vmax.f32 %v354, 0.0
    %v429 = vmax.f32 %v359, 0.0
    %v430 = vmax.f32 %v364, 0.0
    %v431 = vmax.f32 %v369, 0.0
    %v432 = vmax.f32 %v374, 0.0
    %v433 = vmax.f32 %v379, 0.0
    %v434 = vmax.f32 %v384, 0.0
    %v435 = vmax.f32 %v389, 0.0
    %v436 = vmax.f32 %v394, 0.0
    %v437 = vmax.f32 %v399, 0.0
    %v438 = vmax.f32 %v404, 0.0
    %v439 = vmax.f32 %v409, 0.0
    %v440 = vmax.f32 %v414, 0.0
    %v441 = vmax.f32 %v419, 0.0
    %v442 = vmax.f32 %v424, 0.0
    %443 = vmatprep.subr.mxu0 0.0
    %444 = vmatpush1.msra.mxu0 %v442
    %445 = vmatprep.subr.mxu0 0.0
    %446 = vmatpush1.msra.mxu0 %v441
    %447 = vmatprep.subr.mxu0 0.0
    %448 = vmatpush1.msra.mxu0 %v440
    %449 = vmatprep.subr.mxu0 0.0
    %450 = vmatpush1.msra.mxu0 %v439
    %451 = vmatprep.subr.mxu0 0.0
    %452 = vmatpush1.msra.mxu0 %v438
    %453 = vmatprep.subr.mxu0 0.0
    %454 = vmatpush1.msra.mxu0 %v437
    %455 = vmatprep.subr.mxu0 0.0
    %456 = vmatpush1.msra.mxu0 %v436
    %457 = vmatprep.subr.mxu0 0.0
    %458 = vmatpush1.msra.mxu0 %v435
    %459 = vmatprep.subr.mxu0 0.0
    %460 = vmatpush1.msra.mxu0 %v434
    %461 = vmatprep.subr.mxu0 0.0
    %462 = vmatpush1.msra.mxu0 %v433
    %463 = vmatprep.subr.mxu0 0.0
    %464 = vmatpush1.msra.mxu0 %v432
    %465 = vmatprep.subr.mxu0 0.0
    %466 = vmatpush1.msra.mxu0 %v431
    %467 = vmatprep.subr.mxu0 0.0
    %468 = vmatpush1.msra.mxu0 %v430
    %469 = vmatprep.subr.mxu0 0.0
    %470 = vmatpush1.msra.mxu0 %v429
    %471 = vmatprep.subr.mxu0 0.0
    %472 = vmatpush1.msra.mxu0 %v428
    %473 = vmatprep.subr.mxu0 0.0
    %474 = vmatpush1.msra.mxu0 %v427
    %475 = vmatprep.subr.mxu0 0.0
    %476 = vmatpush2.msra.mxu0 0.0
    %477 = vmatprep.subr.mxu0 0.0
    %478 = vmatpush2.msra.mxu0 0.0
    %479 = vmatprep.subr.mxu0 0.0
    %480 = vmatpush2.msra.mxu0 0.0
    %481 = vmatprep.subr.mxu0 0.0
    %482 = vmatpush2.msra.mxu0 0.0
    %483 = vmatprep.subr.mxu0 0.0
    %484 = vmatpush2.msra.mxu0 0.0
    %485 = vmatprep.subr.mxu0 0.0
    %486 = vmatpush2.msra.mxu0 0.0
    %487 = vmatprep.subr.mxu0 0.0
    %488 = vmatpush2.msra.mxu0 0.0
    %489 = vmatprep.subr.mxu0 0.0
    %490 = vmatpush2.msra.mxu0 0.0
    %491 = vmatprep.subr.mxu0 0.0
    %492 = vmatpush2.msra.mxu0 0.0
    %493 = vmatprep.subr.mxu0 0.0
    %494 = vmatpush2.msra.mxu0 0.0
    %495 = vmatprep.subr.mxu0 0.0
    %496 = vmatpush2.msra.mxu0 0.0
    %497 = vmatprep.subr.mxu0 0.0
    %498 = vmatpush2.msra.mxu0 0.0
    %499 = vmatprep.subr.mxu0 0.0
    %500 = vmatpush2.msra.mxu0 0.0
    %501 = vmatprep.subr.mxu0 0.0
    %502 = vmatpush2.msra.mxu0 0.0
    %503 = vmatprep.subr.mxu0 0.0
    %504 = vmatpush2.msra.mxu0 0.0
    %505 = vmatprep.subr.mxu0 0.0
    %506 = vmatpush2.msra.mxu0 0.0
    %507 = vmatprep.mubr.f32.mxu0 0.0
    %508 = vmatmul.mubr.f32.gmra.mxu0 %v82
    %v509 = vpop.f32.mrf.mxu0
    %v510 = vadd.f32 0.0, %v509
    %v511 = vpop.f32.mrf.mxu0
    %512 = vmatprep.mubr.f32.mxu0 0.0
    %513 = vmatmul.mubr.f32.gmra.mxu0 %v83
    %v514 = vpop.f32.mrf.mxu0
    %v515 = vadd.f32 0.0, %v514
    %v516 = vpop.f32.mrf.mxu0
    %517 = vmatprep.mubr.f32.mxu0 0.0
    %518 = vmatmul.mubr.f32.gmra.mxu0 %v84
    %v519 = vpop.f32.mrf.mxu0
    %v520 = vadd.f32 0.0, %v519
    %v521 = vpop.f32.mrf.mxu0
    %522 = vmatprep.mubr.f32.mxu0 0.0
    %523 = vmatmul.mubr.f32.gmra.mxu0 %v85
    %v524 = vpop.f32.mrf.mxu0
    %v525 = vadd.f32 0.0, %v524
    %v526 = vpop.f32.mrf.mxu0
    %527 = vmatprep.mubr.f32.mxu0 0.0
    %528 = vmatmul.mubr.f32.gmra.mxu0 %v86
    %v529 = vpop.f32.mrf.mxu0
    %v530 = vadd.f32 0.0, %v529
    %v531 = vpop.f32.mrf.mxu0
    %532 = vmatprep.mubr.f32.mxu0 0.0
    %533 = vmatmul.mubr.f32.gmra.mxu0 %v87
    %v534 = vpop.f32.mrf.mxu0
    %v535 = vadd.f32 0.0, %v534
    %v536 = vpop.f32.mrf.mxu0
    %537 = vmatprep.mubr.f32.mxu0 0.0
    %538 = vmatmul.mubr.f32.gmra.mxu0 %v88
    %v539 = vpop.f32.mrf.mxu0
    %v540 = vadd.f32 0.0, %v539
    %v541 = vpop.f32.mrf.mxu0
    %542 = vmatprep.mubr.f32.mxu0 0.0
    %543 = vmatmul.mubr.f32.gmra.mxu0 %v89
    %v544 = vpop.f32.mrf.mxu0
    %v545 = vadd.f32 0.0, %v544
    %v546 = vpop.f32.mrf.mxu0
    %547 = vmatprep.mubr.f32.mxu0 0.0
    %548 = vmatmul.mubr.f32.gmra.mxu0 %v90
    %v549 = vpop.f32.mrf.mxu0
    %v550 = vadd.f32 0.0, %v549
    %v551 = vpop.f32.mrf.mxu0
    %552 = vmatprep.mubr.f32.mxu0 0.0
    %553 = vmatmul.mubr.f32.gmra.mxu0 %v91
    %v554 = vpop.f32.mrf.mxu0
    %v555 = vadd.f32 0.0, %v554
    %v556 = vpop.f32.mrf.mxu0
    %557 = vmatprep.mubr.f32.mxu0 0.0
    %558 = vmatmul.mubr.f32.gmra.mxu0 %v92
    %v559 = vpop.f32.mrf.mxu0
    %v560 = vadd.f32 0.0, %v559
    %v561 = vpop.f32.mrf.mxu0
    %562 = vmatprep.mubr.f32.mxu0 0.0
    %563 = vmatmul.mubr.f32.gmra.mxu0 %v93
    %v564 = vpop.f32.mrf.mxu0
    %v565 = vadd.f32 0.0, %v564
    %v566 = vpop.f32.mrf.mxu0
    %567 = vmatprep.mubr.f32.mxu0 0.0
    %568 = vmatmul.mubr.f32.gmra.mxu0 %v94
    %v569 = vpop.f32.mrf.mxu0
    %v570 = vadd.f32 0.0, %v569
    %v571 = vpop.f32.mrf.mxu0
    %572 = vmatprep.mubr.f32.mxu0 0.0
    %573 = vmatmul.mubr.f32.gmra.mxu0 %v95
    %v574 = vpop.f32.mrf.mxu0
    %v575 = vadd.f32 0.0, %v574
    %v576 = vpop.f32.mrf.mxu0
    %577 = vmatprep.mubr.f32.mxu0 0.0
    %578 = vmatmul.mubr.f32.gmra.mxu0 %v96
    %v579 = vpop.f32.mrf.mxu0
    %v580 = vadd.f32 0.0, %v579
    %v581 = vpop.f32.mrf.mxu0
    %582 = vmatprep.mubr.f32.mxu0 0.0
    %583 = vmatmul.mubr.f32.gmra.mxu0 %v97
    %v584 = vpop.f32.mrf.mxu0
    %v585 = vadd.f32 0.0, %v584
    %v586 = vpop.f32.mrf.mxu0
    %587 = vdwg.mxu0
    %v588 = vld [vmem:[#allocation8] sm:$0xff]
    %v589 = vld [vmem:[#allocation8 + $0x8] sm:$0xff]
    %v590 = vld [vmem:[#allocation8 + $0x10] sm:$0xff]
    %v591 = vld [vmem:[#allocation8 + $0x18] sm:$0xff]
    %v592 = vld [vmem:[#allocation8 + $0x20] sm:$0xff]
    %v593 = vld [vmem:[#allocation8 + $0x28] sm:$0xff]
    %v594 = vld [vmem:[#allocation8 + $0x30] sm:$0xff]
    %v595 = vld [vmem:[#allocation8 + $0x38] sm:$0xff]
    %v596 = vld [vmem:[#allocation8 + $0x40] sm:$0xff]
    %v597 = vld [vmem:[#allocation8 + $0x48] sm:$0xff]
    %v598 = vld [vmem:[#allocation8 + $0x50] sm:$0xff]
    %v599 = vld [vmem:[#allocation8 + $0x58] sm:$0xff]
    %v600 = vld [vmem:[#allocation8 + $0x60] sm:$0xff]
    %v601 = vld [vmem:[#allocation8 + $0x68] sm:$0xff]
    %v602 = vld [vmem:[#allocation8 + $0x70] sm:$0xff]
    %v603 = vld [vmem:[#allocation8 + $0x78] sm:$0xff]
    %v604 = vld [vmem:[%s5] sm:$0x1]
    %v606 = vlaneseq
    %v607 = vshrl.u32 %v606, 7
    %v608 = vsub.s32 0, %v607
    %v609 = vrot.slane %v604, %v608
    %611 = vmatprep.subr.mxu0 0.0
    %612 = vmatpush1.msra.mxu0 %v603
    %613 = vmatprep.subr.mxu0 0.0
    %614 = vmatpush1.msra.mxu0 %v602
    %615 = vmatprep.subr.mxu0 0.0
    %616 = vmatpush1.msra.mxu0 %v601
    %617 = vmatprep.subr.mxu0 0.0
    %618 = vmatpush1.msra.mxu0 %v600
    %619 = vmatprep.subr.mxu0 0.0
    %620 = vmatpush1.msra.mxu0 %v599
    %621 = vmatprep.subr.mxu0 0.0
    %622 = vmatpush1.msra.mxu0 %v598
    %623 = vmatprep.subr.mxu0 0.0
    %624 = vmatpush1.msra.mxu0 %v597
    %625 = vmatprep.subr.mxu0 0.0
    %626 = vmatpush1.msra.mxu0 %v596
    %627 = vmatprep.subr.mxu0 0.0
    %628 = vmatpush1.msra.mxu0 %v595
    %629 = vmatprep.subr.mxu0 0.0
    %630 = vmatpush1.msra.mxu0 %v594
    %631 = vmatprep.subr.mxu0 0.0
    %632 = vmatpush1.msra.mxu0 %v593
    %633 = vmatprep.subr.mxu0 0.0
    %634 = vmatpush1.msra.mxu0 %v592
    %635 = vmatprep.subr.mxu0 0.0
    %636 = vmatpush1.msra.mxu0 %v591
    %637 = vmatprep.subr.mxu0 0.0
    %638 = vmatpush1.msra.mxu0 %v590
    %639 = vmatprep.subr.mxu0 0.0
    %640 = vmatpush1.msra.mxu0 %v589
    %641 = vmatprep.subr.mxu0 0.0
    %642 = vmatpush1.msra.mxu0 %v588
    %643 = vmatprep.subr.mxu0 0.0
    %644 = vmatpush2.msra.mxu0 0.0
    %645 = vmatprep.subr.mxu0 0.0
    %646 = vmatpush2.msra.mxu0 0.0
    %647 = vmatprep.subr.mxu0 0.0
    %648 = vmatpush2.msra.mxu0 0.0
    %649 = vmatprep.subr.mxu0 0.0
    %650 = vmatpush2.msra.mxu0 0.0
    %651 = vmatprep.subr.mxu0 0.0
    %652 = vmatpush2.msra.mxu0 0.0
    %653 = vmatprep.subr.mxu0 0.0
    %654 = vmatpush2.msra.mxu0 0.0
    %655 = vmatprep.subr.mxu0 0.0
    %656 = vmatpush2.msra.mxu0 0.0
    %657 = vmatprep.subr.mxu0 0.0
    %658 = vmatpush2.msra.mxu0 0.0
    %659 = vmatprep.subr.mxu0 0.0
    %660 = vmatpush2.msra.mxu0 0.0
    %661 = vmatprep.subr.mxu0 0.0
    %662 = vmatpush2.msra.mxu0 0.0
    %663 = vmatprep.subr.mxu0 0.0
    %664 = vmatpush2.msra.mxu0 0.0
    %665 = vmatprep.subr.mxu0 0.0
    %666 = vmatpush2.msra.mxu0 0.0
    %667 = vmatprep.subr.mxu0 0.0
    %668 = vmatpush2.msra.mxu0 0.0
    %669 = vmatprep.subr.mxu0 0.0
    %670 = vmatpush2.msra.mxu0 0.0
    %671 = vmatprep.subr.mxu0 0.0
    %672 = vmatpush2.msra.mxu0 0.0
    %673 = vmatprep.subr.mxu0 0.0
    %674 = vmatpush2.msra.mxu0 0.0
    %675 = vmatprep.mubr.f32.mxu0 0.0
    %676 = vmatmul.mubr.f32.gmra.mxu0 %v510
    %v677 = vpop.f32.mrf.mxu0
    %v678 = vadd.f32 %v609, %v677
    %v679 = vpop.f32.mrf.mxu0
    %680 = vmatprep.mubr.f32.mxu0 0.0
    %681 = vmatmul.mubr.f32.gmra.mxu0 %v515
    %v682 = vpop.f32.mrf.mxu0
    %v683 = vadd.f32 %v609, %v682
    %v684 = vpop.f32.mrf.mxu0
    %685 = vmatprep.mubr.f32.mxu0 0.0
    %686 = vmatmul.mubr.f32.gmra.mxu0 %v520
    %v687 = vpop.f32.mrf.mxu0
    %v688 = vadd.f32 %v609, %v687
    %v689 = vpop.f32.mrf.mxu0
    %690 = vmatprep.mubr.f32.mxu0 0.0
    %691 = vmatmul.mubr.f32.gmra.mxu0 %v525
    %v692 = vpop.f32.mrf.mxu0
    %v693 = vadd.f32 %v609, %v692
    %v694 = vpop.f32.mrf.mxu0
    %695 = vmatprep.mubr.f32.mxu0 0.0
    %696 = vmatmul.mubr.f32.gmra.mxu0 %v530
    %v697 = vpop.f32.mrf.mxu0
    %v698 = vadd.f32 %v609, %v697
    %v699 = vpop.f32.mrf.mxu0
    %700 = vmatprep.mubr.f32.mxu0 0.0
    %701 = vmatmul.mubr.f32.gmra.mxu0 %v535
    %v702 = vpop.f32.mrf.mxu0
    %v703 = vadd.f32 %v609, %v702
    %v704 = vpop.f32.mrf.mxu0
    %705 = vmatprep.mubr.f32.mxu0 0.0
    %706 = vmatmul.mubr.f32.gmra.mxu0 %v540
    %v707 = vpop.f32.mrf.mxu0
    %v708 = vadd.f32 %v609, %v707
    %v709 = vpop.f32.mrf.mxu0
    %710 = vmatprep.mubr.f32.mxu0 0.0
    %711 = vmatmul.mubr.f32.gmra.mxu0 %v545
    %v712 = vpop.f32.mrf.mxu0
    %v713 = vadd.f32 %v609, %v712
    %v714 = vpop.f32.mrf.mxu0
    %715 = vmatprep.mubr.f32.mxu0 0.0
    %716 = vmatmul.mubr.f32.gmra.mxu0 %v550
    %v717 = vpop.f32.mrf.mxu0
    %v718 = vadd.f32 %v609, %v717
    %v719 = vpop.f32.mrf.mxu0
    %720 = vmatprep.mubr.f32.mxu0 0.0
    %721 = vmatmul.mubr.f32.gmra.mxu0 %v555
    %v722 = vpop.f32.mrf.mxu0
    %v723 = vadd.f32 %v609, %v722
    %v724 = vpop.f32.mrf.mxu0
    %725 = vmatprep.mubr.f32.mxu0 0.0
    %726 = vmatmul.mubr.f32.gmra.mxu0 %v560
    %v727 = vpop.f32.mrf.mxu0
    %v728 = vadd.f32 %v609, %v727
    %v729 = vpop.f32.mrf.mxu0
    %730 = vmatprep.mubr.f32.mxu0 0.0
    %731 = vmatmul.mubr.f32.gmra.mxu0 %v565
    %v732 = vpop.f32.mrf.mxu0
    %v733 = vadd.f32 %v609, %v732
    %v734 = vpop.f32.mrf.mxu0
    %735 = vmatprep.mubr.f32.mxu0 0.0
    %736 = vmatmul.mubr.f32.gmra.mxu0 %v570
    %v737 = vpop.f32.mrf.mxu0
    %v738 = vadd.f32 %v609, %v737
    %v739 = vpop.f32.mrf.mxu0
    %740 = vmatprep.mubr.f32.mxu0 0.0
    %741 = vmatmul.mubr.f32.gmra.mxu0 %v575
    %v742 = vpop.f32.mrf.mxu0
    %v743 = vadd.f32 %v609, %v742
    %v744 = vpop.f32.mrf.mxu0
    %745 = vmatprep.mubr.f32.mxu0 0.0
    %746 = vmatmul.mubr.f32.gmra.mxu0 %v580
    %v747 = vpop.f32.mrf.mxu0
    %v748 = vadd.f32 %v609, %v747
    %v749 = vpop.f32.mrf.mxu0
    %750 = vmatprep.mubr.f32.mxu0 0.0
    %751 = vmatmul.mubr.f32.gmra.mxu0 %v585
    %v752 = vpop.f32.mrf.mxu0
    %v753 = vadd.f32 %v609, %v752
    %v754 = vpop.f32.mrf.mxu0
    %755 = vdwg.mxu0
    %v756 = vlaneseq
    %v757 = vand.u32 %v756, 127
    %vm758 = vcmp.lt.s32.totalorder %v757, 6
    %v759 = vsel %vm758, %v678, -1e+30
    %v760 = vsel %vm758, %v683, -1e+30
    %v761 = vsel %vm758, %v688, -1e+30
    %v762 = vsel %vm758, %v693, -1e+30
    %v763 = vsel %vm758, %v698, -1e+30
    %v764 = vsel %vm758, %v703, -1e+30
    %v765 = vsel %vm758, %v708, -1e+30
    %v766 = vsel %vm758, %v713, -1e+30
    %v767 = vsel %vm758, %v718, -1e+30
    %v768 = vsel %vm758, %v723, -1e+30
    %v769 = vsel %vm758, %v728, -1e+30
    %v770 = vsel %vm758, %v733, -1e+30
    %v771 = vsel %vm758, %v738, -1e+30
    %v772 = vsel %vm758, %v743, -1e+30
    %v773 = vsel %vm758, %v748, -1e+30
    %v774 = vsel %vm758, %v753, -1e+30
    %775 = vmax.xlane.f32.xlu0 %v759
    %v776 = vpop.xlane.xlu0 %775
    %777 = vmax.xlane.f32.xlu0 %v760
    %v778 = vpop.xlane.xlu0 %777
    %779 = vmax.xlane.f32.xlu0 %v761
    %v780 = vpop.xlane.xlu0 %779
    %781 = vmax.xlane.f32.xlu0 %v762
    %v782 = vpop.xlane.xlu0 %781
    %783 = vmax.xlane.f32.xlu0 %v763
    %v784 = vpop.xlane.xlu0 %783
    %785 = vmax.xlane.f32.xlu0 %v764
    %v786 = vpop.xlane.xlu0 %785
    %787 = vmax.xlane.f32.xlu0 %v765
    %v788 = vpop.xlane.xlu0 %787
    %789 = vmax.xlane.f32.xlu0 %v766
    %v790 = vpop.xlane.xlu0 %789
    %791 = vmax.xlane.f32.xlu0 %v767
    %v792 = vpop.xlane.xlu0 %791
    %793 = vmax.xlane.f32.xlu0 %v768
    %v794 = vpop.xlane.xlu0 %793
    %795 = vmax.xlane.f32.xlu0 %v769
    %v796 = vpop.xlane.xlu0 %795
    %797 = vmax.xlane.f32.xlu0 %v770
    %v798 = vpop.xlane.xlu0 %797
    %799 = vmax.xlane.f32.xlu0 %v771
    %v800 = vpop.xlane.xlu0 %799
    %801 = vmax.xlane.f32.xlu0 %v772
    %v802 = vpop.xlane.xlu0 %801
    %803 = vmax.xlane.f32.xlu0 %v773
    %v804 = vpop.xlane.xlu0 %803
    %805 = vmax.xlane.f32.xlu0 %v774
    %v806 = vpop.xlane.xlu0 %805
    %v807 = vsub.f32 %v759, %v776
    %v808 = vsub.f32 %v760, %v778
    %v809 = vsub.f32 %v761, %v780
    %v810 = vsub.f32 %v762, %v782
    %v811 = vsub.f32 %v763, %v784
    %v812 = vsub.f32 %v764, %v786
    %v813 = vsub.f32 %v765, %v788
    %v814 = vsub.f32 %v766, %v790
    %v815 = vsub.f32 %v767, %v792
    %v816 = vsub.f32 %v768, %v794
    %v817 = vsub.f32 %v769, %v796
    %v818 = vsub.f32 %v770, %v798
    %v819 = vsub.f32 %v771, %v800
    %v820 = vsub.f32 %v772, %v802
    %v821 = vsub.f32 %v773, %v804
    %v822 = vsub.f32 %v774, %v806
    %v823 = vmul.f32 %v807, 1.442695
    %v824 = vpow.pop %v823
    %v825 = vmul.f32 %v808, 1.442695
    %v826 = vpow.pop %v825
    %v827 = vmul.f32 %v809, 1.442695
    %v828 = vpow.pop %v827
    %v829 = vmul.f32 %v810, 1.442695
    %v830 = vpow.pop %v829
    %v831 = vmul.f32 %v811, 1.442695
    %v832 = vpow.pop %v831
    %v833 = vmul.f32 %v812, 1.442695
    %v834 = vpow.pop %v833
    %v835 = vmul.f32 %v813, 1.442695
    %v836 = vpow.pop %v835
    %v837 = vmul.f32 %v814, 1.442695
    %v838 = vpow.pop %v837
    %v839 = vmul.f32 %v815, 1.442695
    %v840 = vpow.pop %v839
    %v841 = vmul.f32 %v816, 1.442695
    %v842 = vpow.pop %v841
    %v843 = vmul.f32 %v817, 1.442695
    %v844 = vpow.pop %v843
    %v845 = vmul.f32 %v818, 1.442695
    %v846 = vpow.pop %v845
    %v847 = vmul.f32 %v819, 1.442695
    %v848 = vpow.pop %v847
    %v849 = vmul.f32 %v820, 1.442695
    %v850 = vpow.pop %v849
    %v851 = vmul.f32 %v821, 1.442695
    %v852 = vpow.pop %v851
    %v853 = vmul.f32 %v822, 1.442695
    %v854 = vpow.pop %v853
    %v855 = vsel %vm758, %v824, 0.0
    %v856 = vsel %vm758, %v826, 0.0
    %v857 = vsel %vm758, %v828, 0.0
    %v858 = vsel %vm758, %v830, 0.0
    %v859 = vsel %vm758, %v832, 0.0
    %v860 = vsel %vm758, %v834, 0.0
    %v861 = vsel %vm758, %v836, 0.0
    %v862 = vsel %vm758, %v838, 0.0
    %v863 = vsel %vm758, %v840, 0.0
    %v864 = vsel %vm758, %v842, 0.0
    %v865 = vsel %vm758, %v844, 0.0
    %v866 = vsel %vm758, %v846, 0.0
    %v867 = vsel %vm758, %v848, 0.0
    %v868 = vsel %vm758, %v850, 0.0
    %v869 = vsel %vm758, %v852, 0.0
    %v870 = vsel %vm758, %v854, 0.0
    %871 = vadd.xlane.f32.xlu0 %v855
    %v872 = vpop.xlane.xlu0 %871
    %873 = vadd.xlane.f32.xlu0 %v856
    %v874 = vpop.xlane.xlu0 %873
    %875 = vadd.xlane.f32.xlu0 %v857
    %v876 = vpop.xlane.xlu0 %875
    %877 = vadd.xlane.f32.xlu0 %v858
    %v878 = vpop.xlane.xlu0 %877
    %879 = vadd.xlane.f32.xlu0 %v859
    %v880 = vpop.xlane.xlu0 %879
    %881 = vadd.xlane.f32.xlu0 %v860
    %v882 = vpop.xlane.xlu0 %881
    %883 = vadd.xlane.f32.xlu0 %v861
    %v884 = vpop.xlane.xlu0 %883
    %885 = vadd.xlane.f32.xlu0 %v862
    %v886 = vpop.xlane.xlu0 %885
    %887 = vadd.xlane.f32.xlu0 %v863
    %v888 = vpop.xlane.xlu0 %887
    %889 = vadd.xlane.f32.xlu0 %v864
    %v890 = vpop.xlane.xlu0 %889
    %891 = vadd.xlane.f32.xlu0 %v865
    %v892 = vpop.xlane.xlu0 %891
    %893 = vadd.xlane.f32.xlu0 %v866
    %v894 = vpop.xlane.xlu0 %893
    %895 = vadd.xlane.f32.xlu0 %v867
    %v896 = vpop.xlane.xlu0 %895
    %897 = vadd.xlane.f32.xlu0 %v868
    %v898 = vpop.xlane.xlu0 %897
    %899 = vadd.xlane.f32.xlu0 %v869
    %v900 = vpop.xlane.xlu0 %899
    %901 = vadd.xlane.f32.xlu0 %v870
    %v902 = vpop.xlane.xlu0 %901
    %v903 = vlog2.pop %v872
    %v904 = vmul.f32 %v903, 0.6931472
    %v905 = vlog2.pop %v874
    %v906 = vmul.f32 %v905, 0.6931472
    %v907 = vlog2.pop %v876
    %v908 = vmul.f32 %v907, 0.6931472
    %v909 = vlog2.pop %v878
    %v910 = vmul.f32 %v909, 0.6931472
    %v911 = vlog2.pop %v880
    %v912 = vmul.f32 %v911, 0.6931472
    %v913 = vlog2.pop %v882
    %v914 = vmul.f32 %v913, 0.6931472
    %v915 = vlog2.pop %v884
    %v916 = vmul.f32 %v915, 0.6931472
    %v917 = vlog2.pop %v886
    %v918 = vmul.f32 %v917, 0.6931472
    %v919 = vlog2.pop %v888
    %v920 = vmul.f32 %v919, 0.6931472
    %v921 = vlog2.pop %v890
    %v922 = vmul.f32 %v921, 0.6931472
    %v923 = vlog2.pop %v892
    %v924 = vmul.f32 %v923, 0.6931472
    %v925 = vlog2.pop %v894
    %v926 = vmul.f32 %v925, 0.6931472
    %v927 = vlog2.pop %v896
    %v928 = vmul.f32 %v927, 0.6931472
    %v929 = vlog2.pop %v898
    %v930 = vmul.f32 %v929, 0.6931472
    %v931 = vlog2.pop %v900
    %v932 = vmul.f32 %v931, 0.6931472
    %v933 = vlog2.pop %v902
    %v934 = vmul.f32 %v933, 0.6931472
    %v935 = vsub.f32 %v807, %v904
    %v936 = vsub.f32 %v808, %v906
    %v937 = vsub.f32 %v809, %v908
    %v938 = vsub.f32 %v810, %v910
    %v939 = vsub.f32 %v811, %v912
    %v940 = vsub.f32 %v812, %v914
    %v941 = vsub.f32 %v813, %v916
    %v942 = vsub.f32 %v814, %v918
    %v943 = vsub.f32 %v815, %v920
    %v944 = vsub.f32 %v816, %v922
    %v945 = vsub.f32 %v817, %v924
    %v946 = vsub.f32 %v818, %v926
    %v947 = vsub.f32 %v819, %v928
    %v948 = vsub.f32 %v820, %v930
    %v949 = vsub.f32 %v821, %v932
    %v950 = vsub.f32 %v822, %v934
    %v951 = vsel %vm758, %v935, 0.0
    %v952 = vsel %vm758, %v936, 0.0
    %v953 = vsel %vm758, %v937, 0.0
    %v954 = vsel %vm758, %v938, 0.0
    %v955 = vsel %vm758, %v939, 0.0
    %v956 = vsel %vm758, %v940, 0.0
    %v957 = vsel %vm758, %v941, 0.0
    %v958 = vsel %vm758, %v942, 0.0
    %v959 = vsel %vm758, %v943, 0.0
    %v960 = vsel %vm758, %v944, 0.0
    %v961 = vsel %vm758, %v945, 0.0
    %v962 = vsel %vm758, %v946, 0.0
    %v963 = vsel %vm758, %v947, 0.0
    %v964 = vsel %vm758, %v948, 0.0
    %v965 = vsel %vm758, %v949, 0.0
    %v966 = vsel %vm758, %v950, 0.0
    %v967 = vld [vmem:[%s6] sm:$0xff]
    %968 = vmatprep.subr.mxu0 0.0
    %969 = vmatpush1.msra.mxu0 %v966
    %970 = vmatprep.subr.mxu0 0.0
    %971 = vmatpush1.msra.mxu0 %v965
    %972 = vmatprep.subr.mxu0 0.0
    %973 = vmatpush1.msra.mxu0 %v964
    %974 = vmatprep.subr.mxu0 0.0
    %975 = vmatpush1.msra.mxu0 %v963
    %976 = vmatprep.subr.mxu0 0.0
    %977 = vmatpush1.msra.mxu0 %v962
    %978 = vmatprep.subr.mxu0 0.0
    %979 = vmatpush1.msra.mxu0 %v961
    %980 = vmatprep.subr.mxu0 0.0
    %981 = vmatpush1.msra.mxu0 %v960
    %982 = vmatprep.subr.mxu0 0.0
    %983 = vmatpush1.msra.mxu0 %v959
    %984 = vmatprep.subr.mxu0 0.0
    %985 = vmatpush1.msra.mxu0 %v958
    %986 = vmatprep.subr.mxu0 0.0
    %987 = vmatpush1.msra.mxu0 %v957
    %988 = vmatprep.subr.mxu0 0.0
    %989 = vmatpush1.msra.mxu0 %v956
    %990 = vmatprep.subr.mxu0 0.0
    %991 = vmatpush1.msra.mxu0 %v955
    %992 = vmatprep.subr.mxu0 0.0
    %993 = vmatpush1.msra.mxu0 %v954
    %994 = vmatprep.subr.mxu0 0.0
    %995 = vmatpush1.msra.mxu0 %v953
    %996 = vmatprep.subr.mxu0 0.0
    %997 = vmatpush1.msra.mxu0 %v952
    %998 = vmatprep.subr.mxu0 0.0
    %999 = vmatpush1.msra.mxu0 %v951
    %1000 = vmatprep.subr.mxu0 0.0
    %1001 = vmatpush2.msra.mxu0 0.0
    %1002 = vmatprep.subr.mxu0 0.0
    %1003 = vmatpush2.msra.mxu0 0.0
    %1004 = vmatprep.subr.mxu0 0.0
    %1005 = vmatpush2.msra.mxu0 0.0
    %1006 = vmatprep.subr.mxu0 0.0
    %1007 = vmatpush2.msra.mxu0 0.0
    %1008 = vmatprep.subr.mxu0 0.0
    %1009 = vmatpush2.msra.mxu0 0.0
    %1010 = vmatprep.subr.mxu0 0.0
    %1011 = vmatpush2.msra.mxu0 0.0
    %1012 = vmatprep.subr.mxu0 0.0
    %1013 = vmatpush2.msra.mxu0 0.0
    %1014 = vmatprep.subr.mxu0 0.0
    %1015 = vmatpush2.msra.mxu0 0.0
    %1016 = vmatprep.subr.mxu0 0.0
    %1017 = vmatpush2.msra.mxu0 0.0
    %1018 = vmatprep.subr.mxu0 0.0
    %1019 = vmatpush2.msra.mxu0 0.0
    %1020 = vmatprep.subr.mxu0 0.0
    %1021 = vmatpush2.msra.mxu0 0.0
    %1022 = vmatprep.subr.mxu0 0.0
    %1023 = vmatpush2.msra.mxu0 0.0
    %1024 = vmatprep.subr.mxu0 0.0
    %1025 = vmatpush2.msra.mxu0 0.0
    %1026 = vmatprep.subr.mxu0 0.0
    %1027 = vmatpush2.msra.mxu0 0.0
    %1028 = vmatprep.subr.mxu0 0.0
    %1029 = vmatpush2.msra.mxu0 0.0
    %1030 = vmatprep.subr.mxu0 0.0
    %1031 = vmatpush2.msra.mxu0 0.0
    %1032 = vmatprep.mubr.f32.mxu0 0.0
    %1033 = vmatmul.mubr.f32.gmra.mxu0 %v967
    %v1034 = vpop.f32.mrf.mxu0
    %v1035 = vadd.f32 0.0, %v1034
    %v1036 = vpop.f32.mrf.mxu0
    %1037 = vdwg.mxu0
    %1038 = vst [vmem:[#allocation10] sm:$0xff] %v1035
    // Predicated region
    $region46: #{tpu_custom_call.1} parent=1 // pred_check
      _
    $region47: #{tpu_custom_call.1} parent=1 // pred_check_branch
      %1040 = sbr.rel (0) target = $region49
    $region48: #{tpu_custom_call.1} parent=1 // pred_region
      %s1042 = ssub.s32 128, 128
      %1043 = vsyncadd [#allocation4], %s1042
      %s1045 = sshll.u32 [#allocation10], 4
      %s1046 = int_to_ptr.vmem [resolvable:$true] %s1045
      %1048 = dma.vmem_to_hbm [thread:$0]  %s1046, 128, %s7, [#allocation4]
    $region49: #{tpu_custom_call.1} parent=1 // pred_fallthru
      _
    // Predicated region
    $region50: #{tpu_custom_call.1} parent=1 // pred_check
      _
    $region51: #{tpu_custom_call.1} parent=1 // pred_check_branch
      %1050 = sbr.rel (0) target = $region53
    $region52: #{tpu_custom_call.1} parent=1 // pred_region
      %1051 = dma.done [#allocation4], 128
    $region53: #{tpu_custom_call.1} parent=1 // pred_fallthru
      _
    %1052 = vsyncpa [#allocation3], 1
    %1053 = vsyncpa [#allocation6], 1
    %1054 = vsyncpa [#allocation9], 1
    %1055 = vsyncpa [#allocation4], 1

</llo_original>
